<compile_context>
chip_gen: v5e
topology: v5e:2x2
jax: 0.10.0
libtpu: 0.0.40
codegen_flags: <defaults>
</compile_context>

<pallas_src>
import jax
import jax.numpy as jnp
from jax.experimental import pallas as pl
from jax.experimental.pallas import tpu as pltpu


# ----------------------------------------------------------------------------
# Kernel
# ----------------------------------------------------------------------------
def critic_kernel(s_ref, a_ref, ws1_ref, wa1_ref, b1_ref,
                  wl1_ref, bl1_ref, wl2_ref, bl2_ref, out_ref):
    mm = ws1_ref.dtype

    # Layer 1: [relu(s1(s)) | relu(a1(a)) | 0-pad].  ws1 carries the s1 weight
    # in columns [:h2] (zeros elsewhere), wa1 carries the a1 weight in columns
    # [h2:H]; the two narrow dots therefore sum to exactly the
    # torch.cat([q_s, q_a], 1) activation, lane-padded with zeros to Hp.
    q1 = jnp.dot(s_ref[...].astype(mm), ws1_ref[...],
                 preferred_element_type=jnp.float32)
    q1 = q1 + jnp.dot(a_ref[...].astype(mm), wa1_ref[...],
                      preferred_element_type=jnp.float32)
    # Bias + ReLU in f32 (v5e-safe), then one cast so the big matmul sees a
    # bf16 operand (no-op on the f32 path).
    q1 = jnp.maximum(q1 + b1_ref[...], 0.0).astype(mm)

    # Layer l1: h = relu(q1 @ Wl1 + bl1)  -- full lane-dense (Hp, Hp) matmul.
    h = jnp.dot(q1, wl1_ref[...], preferred_element_type=jnp.float32)
    h = jnp.maximum(h + bl1_ref[...], 0.0)

    # Layer l2 (out_features == 1): VPU multiply + XLU lane reduction, scalar
    # bias from SMEM.  Keeps the 1-wide head off the MXU.
    out_ref[...] = (jnp.sum(h * wl2_ref[...], axis=-1, keepdims=True)
                    + bl2_ref[0, 0])


# ----------------------------------------------------------------------------
# Helpers
# ----------------------------------------------------------------------------
def _cdiv(a, b):
    return -(-a // b)


def _round_up(x, m):
    return ((x + m - 1) // m) * m


def _choose_batch_tiling(B, *, bf16, max_tile=512, megacore_min_batch=2048):
    """Balanced batch tiling.

    - B <= max_tile: one full-array tile (no row padding, no pipeline steps).
    - otherwise: ceil-balanced tiles rounded to the bf16 (16) / f32 (8)
      sublane packing; for very large batches force an even number >= 2 of
      grid steps so both v7x TensorCores get work under
      dimension_semantics=("parallel",).
    """
    n_steps = _cdiv(B, max_tile)
    if n_steps <= 1:
        return B, B                       # single step, block == full array
    if B >= megacore_min_batch and (n_steps % 2):
        n_steps += 1                      # even step count for 2 TCs (v7x)
    align = 16 if bf16 else 8
    tb = _round_up(_cdiv(B, n_steps), align)
    return tb, _round_up(B, tb)


# ----------------------------------------------------------------------------
# Forward wrapper
# ----------------------------------------------------------------------------
def critic_forward(s, a, packed_params, *, max_batch_tile=512,
                   megacore_min_batch=2048):
    """Critic forward in one pallas_call, batch-tiled; params pre-packed."""
    ws1, wa1, b1, wl1, bl1, wl2, bl2 = packed_params
    B, state_dim = s.shape
    action_dim = a.shape[1]
    Hp = wl1.shape[0]
    mm_is_bf16 = (ws1.dtype == jnp.bfloat16)
    mm_bytes = ws1.dtype.itemsize

    tb, b_pad = _choose_batch_tiling(
        B, bf16=mm_is_bf16, max_tile=max_batch_tile,
        megacore_min_batch=megacore_min_batch)

    s_in, a_in = s, a
    if b_pad != B:                         # only for awkward batch sizes
        s_in = jnp.pad(s, ((0, b_pad - B), (0, 0)))
        a_in = jnp.pad(a, ((0, b_pad - B), (0, 0)))

    grid = (b_pad // tb,)

    # VMEM budget: double-buffered operands (conservative: constant weight
    # blocks counted twice) + f32/bf16 intermediates, with 2x headroom.
    weight_vmem = ((ws1.size + wa1.size + wl1.size) * mm_bytes
                   + (b1.size + bl1.size + wl2.size) * 4)
    act_vmem = tb * (state_dim + action_dim + 1) * 4
    inter_vmem = tb * Hp * (4 + 4 + mm_bytes)
    vmem_needed = 2 * (weight_vmem + act_vmem) + inter_vmem
    vmem_limit = int(min(max(2 * vmem_needed, 32 << 20), 64 << 20))

    flops = 2 * b_pad * Hp * (state_dim + action_dim + Hp + 1)
    bytes_accessed = int((s_in.size + a_in.size) * 4 + weight_vmem + b_pad * 4)

    out = pl.pallas_call(
        critic_kernel,
        out_shape=jax.ShapeDtypeStruct((b_pad, 1), jnp.float32),
        grid=grid,
        in_specs=[
            pl.BlockSpec((tb, state_dim), lambda i: (i, 0)),   # s, batch-tiled
            pl.BlockSpec((tb, action_dim), lambda i: (i, 0)),  # a, batch-tiled
            pl.BlockSpec((state_dim, Hp), lambda i: (0, 0)),   # s1 block of W1
            pl.BlockSpec((action_dim, Hp), lambda i: (0, 0)),  # a1 block of W1
            pl.BlockSpec((1, Hp), lambda i: (0, 0)),           # [bs1|ba1|0]
            pl.BlockSpec((Hp, Hp), lambda i: (0, 0)),          # l1 weight [in,out]
            pl.BlockSpec((1, Hp), lambda i: (0, 0)),           # l1 bias
            pl.BlockSpec((1, Hp), lambda i: (0, 0)),           # l2 weight row
            pl.BlockSpec(memory_space=pltpu.MemorySpace.SMEM), # l2 bias scalar
        ],
        out_specs=pl.BlockSpec((tb, 1), lambda i: (i, 0)),
        compiler_params=pltpu.CompilerParams(
            dimension_semantics=("parallel",),
            vmem_limit_bytes=vmem_limit),
        cost_estimate=pl.CostEstimate(
            flops=int(flops), transcendentals=0,
            bytes_accessed=bytes_accessed),
    )(s_in, a_in, ws1, wa1, b1, wl1, bl1, wl2, bl2)

    return out if b_pad == B else out[:B]


# ----------------------------------------------------------------------------
# Parameter init (PyTorch nn.Linear-style) and packing
# ----------------------------------------------------------------------------
def init_critic_params(key, state_dim, action_dim, hidden_width):
    """Raw params in torch-module semantics, stored [fan_in, fan_out]."""
    h2 = hidden_width // 2

    def linear(k, fan_in, fan_out):
        kw, kb = jax.random.split(k)
        bound = 1.0 / (fan_in ** 0.5)
        w = jax.random.uniform(kw, (fan_in, fan_out), jnp.float32, -bound, bound)
        b = jax.random.uniform(kb, (fan_out,), jnp.float32, -bound, bound)
        return w, b

    k1, k2, k3, k4 = jax.random.split(key, 4)
    ws1, bs1 = linear(k1, state_dim, h2)                 # s1
    wa1, ba1 = linear(k2, action_dim, h2)                # a1
    wl1, bl1 = linear(k3, hidden_width, hidden_width)    # l1
    wl2, bl2 = linear(k4, hidden_width, 1)               # l2
    return dict(ws1=ws1, bs1=bs1, wa1=wa1, ba1=ba1,
                wl1=wl1, bl1=bl1, wl2=wl2, bl2=bl2)


def pack_critic_params(params, *, use_bf16_matmul=True, lane_multiple=128):
    """Pack + lane-pad params for the kernel.

      ws1 : (state_dim, Hp)  s1 weight in cols [:h2], zeros elsewhere
      wa1 : (action_dim, Hp) a1 weight in cols [h2:H], zeros elsewhere
      b1  : (1, Hp)          [bs1 | ba1 | 0]
      wl1 : (Hp, Hp)         l1 weight in [:H,:H], zeros elsewhere
      bl1 : (1, Hp)          [bl1 | 0]
      wl2 : (1, Hp)          [wl2 | 0]   (l2 weight as a row)
      bl2 : (1, 1)           scalar (SMEM)
    Zero padding is exact through ReLU and the final dot (exact in bf16 too).
    """
    ws1, bs1 = params["ws1"], params["bs1"]
    wa1, ba1 = params["wa1"], params["ba1"]
    wl1, bl1 = params["wl1"], params["bl1"]
    wl2, bl2 = params["wl2"], params["bl2"]

    state_dim, h2 = ws1.shape
    action_dim = wa1.shape[0]
    H = wl1.shape[0]
    Hp = _round_up(H, lane_multiple)
    mm = jnp.bfloat16 if use_bf16_matmul else jnp.float32

    ws1_p = jnp.zeros((state_dim, Hp), jnp.float32).at[:, :h2].set(ws1)
    wa1_p = jnp.zeros((action_dim, Hp), jnp.float32).at[:, h2:H].set(wa1)
    b1_p = (jnp.zeros((1, Hp), jnp.float32)
            .at[0, :h2].set(bs1).at[0, h2:H].set(ba1))
    wl1_p = jnp.zeros((Hp, Hp), jnp.float32).at[:H, :H].set(wl1)
    bl1_p = jnp.zeros((1, Hp), jnp.float32).at[0, :H].set(bl1)
    wl2_p = jnp.zeros((1, Hp), jnp.float32).at[0, :H].set(wl2[:, 0])
    bl2_p = bl2.reshape(1, 1).astype(jnp.float32)

    return (ws1_p.astype(mm), wa1_p.astype(mm), b1_p,
            wl1_p.astype(mm), bl1_p, wl2_p, bl2_p)


# ----------------------------------------------------------------------------
# References
# ----------------------------------------------------------------------------
def critic_reference_f32(s, a, params):
    """Pure-f32 reference with the PyTorch module semantics."""
    q_s = jnp.maximum(s @ params["ws1"] + params["bs1"], 0.0)
    q_a = jnp.maximum(a @ params["wa1"] + params["ba1"], 0.0)
    q = jnp.concatenate([q_s, q_a], axis=1)
    q = jnp.maximum(q @ params["wl1"] + params["bl1"], 0.0)
    return q @ params["wl2"] + params["bl2"]


def critic_reference_matched(s, a, packed_params):
    """Reference using the same operand-dtype / f32-accumulate recipe as the
    kernel (on the packed, lane-padded params) for a tight comparison."""
    ws1, wa1, b1, wl1, bl1, wl2, bl2 = packed_params
    mm = ws1.dtype
    q1 = (jnp.dot(s.astype(mm), ws1, preferred_element_type=jnp.float32)
          + jnp.dot(a.astype(mm), wa1, preferred_element_type=jnp.float32))
    q1 = jnp.maximum(q1 + b1, 0.0).astype(mm)
    h = jnp.dot(q1, wl1, preferred_element_type=jnp.float32)
    h = jnp.maximum(h + bl1, 0.0)
    return jnp.sum(h * wl2, axis=-1, keepdims=True) + bl2[0, 0]


# ----------------------------------------------------------------------------
if __name__ == "__main__":
    batch = 8
    state_dim = 16
    action_dim = 4
    hidden_width = 32

    key = jax.random.PRNGKey(0)
    k_s, k_a, k_p = jax.random.split(key, 3)

    s = jax.random.normal(k_s, (batch, state_dim), jnp.float32)
    a = jax.random.normal(k_a, (batch, action_dim), jnp.float32)
    params = init_critic_params(k_p, state_dim, action_dim, hidden_width)
    q_ref = critic_reference_f32(s, a, params)

    # f32 MXU path: must match module semantics tightly.
    packed_f32 = pack_critic_params(params, use_bf16_matmul=False)
    q_f32 = jax.block_until_ready(critic_forward(s, a, packed_f32))
    assert q_f32.shape == (batch, 1)
    assert jnp.allclose(q_f32, q_ref, atol=1e-4, rtol=1e-4)

    # bf16-MXU path (v5e/v6e/v7x recipe): tight vs matched recipe, loose vs f32.
    packed_bf16 = pack_critic_params(params, use_bf16_matmul=True)
    q_bf16 = jax.block_until_ready(critic_forward(s, a, packed_bf16))
    q_ref_matched = critic_reference_matched(s, a, packed_bf16)
    assert q_bf16.shape == (batch, 1)
    assert jnp.allclose(q_bf16, q_ref_matched, atol=2e-3, rtol=2e-3)
    assert jnp.allclose(q_bf16, q_ref, atol=5e-2, rtol=5e-2)

    # Multi-step grid path (balanced, 16-aligned tiles + row padding sliced off).
    B2 = 200
    k_s2, k_a2 = jax.random.split(jax.random.PRNGKey(1))
    s2 = jax.random.normal(k_s2, (B2, state_dim), jnp.float32)
    a2 = jax.random.normal(k_a2, (B2, action_dim), jnp.float32)
    q2 = jax.block_until_ready(
        critic_forward(s2, a2, packed_bf16, max_batch_tile=64))
    q2_ref = critic_reference_f32(s2, a2, params)
    assert q2.shape == (B2, 1)
    assert jnp.allclose(q2, q2_ref, atol=5e-2, rtol=5e-2)

    print("KERNEL_OK")
</pallas_src>

<mosaic_0001>
module attributes {stable_mosaic.version = 11 : i64} {
  func.func @critic_kernel(%arg0: i32, %arg1: memref<8x16xf32, #tpu.memory_space<vmem>>, %arg2: memref<8x4xf32, #tpu.memory_space<vmem>>, %arg3: memref<16x128xf32, #tpu.memory_space<vmem>>, %arg4: memref<4x128xf32, #tpu.memory_space<vmem>>, %arg5: memref<1x128xf32, #tpu.memory_space<vmem>>, %arg6: memref<128x128xf32, #tpu.memory_space<vmem>>, %arg7: memref<1x128xf32, #tpu.memory_space<vmem>>, %arg8: memref<1x128xf32, #tpu.memory_space<vmem>>, %arg9: memref<1x1xf32, #tpu.memory_space<smem>>, %arg10: memref<8x1xf32, #tpu.memory_space<vmem>>) attributes {dimension_semantics = [#tpu.dimension_semantics<parallel>], iteration_bounds = array<i64: 1>, scalar_prefetch = 0 : i64, scratch_operands = 0 : i64, tpu.core_type = #tpu.core_type<tc>, window_params = [{transform_indices = @transform_0, window_bounds = array<i64: 8, 16>}, {transform_indices = @transform_1, window_bounds = array<i64: 8, 4>}, {pipeline_mode = #tpu.pipeline_mode<synchronous>, transform_indices = @transform_2, window_bounds = array<i64: 16, 128>}, {pipeline_mode = #tpu.pipeline_mode<synchronous>, transform_indices = @transform_3, window_bounds = array<i64: 4, 128>}, {pipeline_mode = #tpu.pipeline_mode<synchronous>, transform_indices = @transform_4, window_bounds = array<i64: 1, 128>}, {pipeline_mode = #tpu.pipeline_mode<synchronous>, transform_indices = @transform_5, window_bounds = array<i64: 128, 128>}, {pipeline_mode = #tpu.pipeline_mode<synchronous>, transform_indices = @transform_6, window_bounds = array<i64: 1, 128>}, {pipeline_mode = #tpu.pipeline_mode<synchronous>, transform_indices = @transform_7, window_bounds = array<i64: 1, 128>}, {transform_indices = @transform_8, window_bounds = array<i64: 1, 1>}, {transform_indices = @transform_9, window_bounds = array<i64: 8, 1>}]} {
    %c0 = arith.constant 0 : index
    %c0_0 = arith.constant 0 : index
    %0 = vector.load %arg1[%c0, %c0_0] : memref<8x16xf32, #tpu.memory_space<vmem>>, vector<8x16xf32>
    %c0_1 = arith.constant 0 : index
    %c0_2 = arith.constant 0 : index
    %1 = vector.load %arg3[%c0_1, %c0_2] : memref<16x128xf32, #tpu.memory_space<vmem>>, vector<16x128xf32>
    %cst = arith.constant dense<0.000000e+00> : vector<8x128xf32>
    %2 = tpu.matmul %0, %1, %cst {dimension_numbers = #tpu.dot_dimension_numbers<[1], [0], [0], [1], [0, 0, 1, 1], [], []>} : vector<8x16xf32>, vector<16x128xf32>, vector<8x128xf32> -> vector<8x128xf32>
    %c0_3 = arith.constant 0 : index
    %c0_4 = arith.constant 0 : index
    %3 = vector.load %arg2[%c0_3, %c0_4] : memref<8x4xf32, #tpu.memory_space<vmem>>, vector<8x4xf32>
    %c0_5 = arith.constant 0 : index
    %c0_6 = arith.constant 0 : index
    %4 = vector.load %arg4[%c0_5, %c0_6] : memref<4x128xf32, #tpu.memory_space<vmem>>, vector<4x128xf32>
    %cst_7 = arith.constant dense<0.000000e+00> : vector<8x128xf32>
    %5 = tpu.matmul %3, %4, %cst_7 {dimension_numbers = #tpu.dot_dimension_numbers<[1], [0], [0], [1], [0, 0, 1, 1], [], []>} : vector<8x4xf32>, vector<4x128xf32>, vector<8x128xf32> -> vector<8x128xf32>
    %6 = arith.addf %2, %5 : vector<8x128xf32>
    %c0_8 = arith.constant 0 : index
    %c0_9 = arith.constant 0 : index
    %7 = vector.load %arg5[%c0_8, %c0_9] : memref<1x128xf32, #tpu.memory_space<vmem>>, vector<1x128xf32>
    %8 = vector.broadcast %7 : vector<1x128xf32> to vector<8x128xf32>
    %9 = arith.addf %6, %8 : vector<8x128xf32>
    %cst_10 = arith.constant 0.000000e+00 : f32
    %10 = vector.broadcast %cst_10 : f32 to vector<8x128xf32>
    %11 = arith.maximumf %9, %10 : vector<8x128xf32>
    %c0_11 = arith.constant 0 : index
    %c0_12 = arith.constant 0 : index
    %12 = vector.load %arg6[%c0_11, %c0_12] : memref<128x128xf32, #tpu.memory_space<vmem>>, vector<128x128xf32>
    %cst_13 = arith.constant dense<0.000000e+00> : vector<8x128xf32>
    %13 = tpu.matmul %11, %12, %cst_13 {dimension_numbers = #tpu.dot_dimension_numbers<[1], [0], [0], [1], [0, 0, 1, 1], [], []>} : vector<8x128xf32>, vector<128x128xf32>, vector<8x128xf32> -> vector<8x128xf32>
    %c0_14 = arith.constant 0 : index
    %c0_15 = arith.constant 0 : index
    %14 = vector.load %arg7[%c0_14, %c0_15] : memref<1x128xf32, #tpu.memory_space<vmem>>, vector<1x128xf32>
    %15 = vector.broadcast %14 : vector<1x128xf32> to vector<8x128xf32>
    %16 = arith.addf %13, %15 : vector<8x128xf32>
    %cst_16 = arith.constant 0.000000e+00 : f32
    %17 = vector.broadcast %cst_16 : f32 to vector<8x128xf32>
    %18 = arith.maximumf %16, %17 : vector<8x128xf32>
    %c0_17 = arith.constant 0 : index
    %c0_18 = arith.constant 0 : index
    %19 = vector.load %arg8[%c0_17, %c0_18] : memref<1x128xf32, #tpu.memory_space<vmem>>, vector<1x128xf32>
    %20 = vector.broadcast %19 : vector<1x128xf32> to vector<8x128xf32>
    %21 = arith.mulf %18, %20 : vector<8x128xf32>
    %cst_19 = arith.constant dense<0.000000e+00> : vector<8xf32>
    %22 = vector.multi_reduction <add>, %21, %cst_19 [1] : vector<8x128xf32> to vector<8xf32>
    %23 = vector.shape_cast %22 : vector<8xf32> to vector<8x1xf32>
    %c0_20 = arith.constant 0 : index
    %c0_21 = arith.constant 0 : index
    %24 = memref.load %arg9[%c0_20, %c0_21] : memref<1x1xf32, #tpu.memory_space<smem>>
    %25 = vector.broadcast %24 : f32 to vector<8x1xf32>
    %26 = arith.addf %23, %25 : vector<8x1xf32>
    %c0_22 = arith.constant 0 : index
    %c0_23 = arith.constant 0 : index
    %27 = vector.load %arg10[%c0_22, %c0_23] : memref<8x1xf32, #tpu.memory_space<vmem>>, vector<8x1xf32>
    tpu.vector_store %arg10[%c0_22, %c0_23], %26 {strides = array<i32>} : memref<8x1xf32, #tpu.memory_space<vmem>>, vector<8x1xf32>,
    return
  }
  func.func @transform_0(%arg0: i32) -> (i32, i32) {
    %c0_i32 = arith.constant 0 : i32
    %c0_i32_0 = arith.constant 0 : i32
    return %arg0, %c0_i32 : i32, i32
  }
  func.func @transform_1(%arg0: i32) -> (i32, i32) {
    %c0_i32 = arith.constant 0 : i32
    %c0_i32_0 = arith.constant 0 : i32
    return %arg0, %c0_i32 : i32, i32
  }
  func.func @transform_2(%arg0: i32) -> (i32, i32) {
    %c0_i32 = arith.constant 0 : i32
    %c0_i32_0 = arith.constant 0 : i32
    %c0_i32_1 = arith.constant 0 : i32
    return %c0_i32, %c0_i32_0 : i32, i32
  }
  func.func @transform_3(%arg0: i32) -> (i32, i32) {
    %c0_i32 = arith.constant 0 : i32
    %c0_i32_0 = arith.constant 0 : i32
    %c0_i32_1 = arith.constant 0 : i32
    return %c0_i32, %c0_i32_0 : i32, i32
  }
  func.func @transform_4(%arg0: i32) -> (i32, i32) {
    %c0_i32 = arith.constant 0 : i32
    %c0_i32_0 = arith.constant 0 : i32
    %c0_i32_1 = arith.constant 0 : i32
    return %c0_i32, %c0_i32_0 : i32, i32
  }
  func.func @transform_5(%arg0: i32) -> (i32, i32) {
    %c0_i32 = arith.constant 0 : i32
    %c0_i32_0 = arith.constant 0 : i32
    %c0_i32_1 = arith.constant 0 : i32
    return %c0_i32, %c0_i32_0 : i32, i32
  }
  func.func @transform_6(%arg0: i32) -> (i32, i32) {
    %c0_i32 = arith.constant 0 : i32
    %c0_i32_0 = arith.constant 0 : i32
    %c0_i32_1 = arith.constant 0 : i32
    return %c0_i32, %c0_i32_0 : i32, i32
  }
  func.func @transform_7(%arg0: i32) -> (i32, i32) {
    %c0_i32 = arith.constant 0 : i32
    %c0_i32_0 = arith.constant 0 : i32
    %c0_i32_1 = arith.constant 0 : i32
    return %c0_i32, %c0_i32_0 : i32, i32
  }
  func.func @transform_8(%arg0: i32) -> (i32, i32) {
    %c0_i32 = arith.constant 0 : i32
    %c0_i32_0 = arith.constant 0 : i32
    %c0_i32_1 = arith.constant 0 : i32
    return %c0_i32, %c0_i32_0 : i32, i32
  }
  func.func @transform_9(%arg0: i32) -> (i32, i32) {
    %c0_i32 = arith.constant 0 : i32
    %c0_i32_0 = arith.constant 0 : i32
    return %arg0, %c0_i32 : i32, i32
  }
}

</mosaic_0001>

<llo_original>
// kernel: tpu_custom_call.1
$region0: #{tpu_custom_call.1}
  #allocation0 [shape = 'u32[]', space=smem, size = 0x4, offset = 0x4, fixed_abs, tag = 'smem constant byte address 0x4 - core index']
  #allocation1 [shape = 'u32[72,128]{1,0:T(1,128)}', space=vmem, size = 0x9000, scoped, tag = 'internal scratch']
  #allocation2 [shape = 'f32[1,1]{1,0:T(1,128)S(6)}', space=smem, size = 0x200, scoped, tag = 'scoped memory for tpu_custom_call.1']
  %s0 = inlined_call_operand.vmem [shape: f32[8,16], index: 0, kind: input, shape index: {}]
  %s1 = inlined_call_operand.vmem [shape: f32[8,4], index: 1, kind: input, shape index: {}]
  %s2 = inlined_call_operand.hbm [shape: f32[16,128], index: 2, kind: input, shape index: {}]
  %s3 = inlined_call_operand.vmem [shape: f32[4,128], index: 3, kind: input, shape index: {}]
  %s4 = inlined_call_operand.vmem [shape: f32[1,128], index: 4, kind: input, shape index: {}]
  %s5 = inlined_call_operand.hbm [shape: f32[128,128], index: 5, kind: input, shape index: {}]
  %s6 = inlined_call_operand.vmem [shape: f32[1,128], index: 6, kind: input, shape index: {}]
  %s7 = inlined_call_operand.vmem [shape: f32[1,128], index: 7, kind: input, shape index: {}]
  %s8 = inlined_call_operand.<no memory space> [shape: f32[1,1], index: 8, kind: input, shape index: {}]
  %s9 = inlined_call_operand.vmem [shape: f32[8,1], index: 9, kind: output, shape index: {}]
  %s10 = sld [smem:[#allocation0]]
  $region54: #{tpu_custom_call.1} parent=0
    _
  %s12 = ssub.s32 1, %s10
  %s13 = scalar_select 0, %s12, %s10
  %14 = sst [smem:[#allocation2]] %s8
  $region1: #{tpu_custom_call.1} parent=0
    #allocation3 [shape = 'u8[8192]{0}', space=vmem, size = 0x2000, scoped, tag = 'input window, operand 2, single buffered']
    #allocation4 [shape = 's32[1]{0}', space=sflag, size = 0x4, scoped, tag = 'scoped memory for tpu_custom_call.1']
    #allocation5 [shape = 'u8[65536]{0}', space=vmem, size = 0x10000, scoped, tag = 'input window, operand 5, single buffered']
    #allocation6 [shape = 's32[1]{0}', space=sflag, size = 0x4, scoped, tag = 'scoped memory for tpu_custom_call.1']
    %15 = vsyncpa [#allocation4], 0
    %16 = vsyncpa [#allocation6], 0
    // Predicated region
    $region2: #{tpu_custom_call.1} parent=1 // pred_check
      _
    $region3: #{tpu_custom_call.1} parent=1 // pred_check_branch
      %18 = sbr.rel (0) target = $region5
    $region4: #{tpu_custom_call.1} parent=1 // pred_region
      _
    $region5: #{tpu_custom_call.1} parent=1 // pred_fallthru
      _
    // Predicated region
    $region6: #{tpu_custom_call.1} parent=1 // pred_check
      _
    $region7: #{tpu_custom_call.1} parent=1 // pred_check_branch
      %20 = sbr.rel (0) target = $region9
    $region8: #{tpu_custom_call.1} parent=1 // pred_region
      _
    $region9: #{tpu_custom_call.1} parent=1 // pred_fallthru
      _
    // Predicated region
    $region10: #{tpu_custom_call.1} parent=1 // pred_check
      _
    $region11: #{tpu_custom_call.1} parent=1 // pred_check_branch
      %22 = sbr.rel (0) target = $region13
    $region12: #{tpu_custom_call.1} parent=1 // pred_region
      %24 = vsyncadd [#allocation4], 0
      %s25 = sshll.u32 %s2, 4
      %s26 = int_to_ptr.hbm [resolvable:$true] %s25
      %s27 = sshll.u32 [#allocation3], 4
      %s28 = int_to_ptr.vmem [resolvable:$true] %s27
      %33 = dma.hbm_to_vmem [thread:$0]  %s26, 256, %s28, [#allocation4], 128, 128, 8
    $region13: #{tpu_custom_call.1} parent=1 // pred_fallthru
      _
    // Predicated region
    $region14: #{tpu_custom_call.1} parent=1 // pred_check
      _
    $region15: #{tpu_custom_call.1} parent=1 // pred_check_branch
      %35 = sbr.rel (0) target = $region17
    $region16: #{tpu_custom_call.1} parent=1 // pred_region
      _
    $region17: #{tpu_custom_call.1} parent=1 // pred_fallthru
      _
    // Predicated region
    $region18: #{tpu_custom_call.1} parent=1 // pred_check
      _
    $region19: #{tpu_custom_call.1} parent=1 // pred_check_branch
      %37 = sbr.rel (0) target = $region21
    $region20: #{tpu_custom_call.1} parent=1 // pred_region
      _
    $region21: #{tpu_custom_call.1} parent=1 // pred_fallthru
      _
    // Predicated region
    $region22: #{tpu_custom_call.1} parent=1 // pred_check
      _
    $region23: #{tpu_custom_call.1} parent=1 // pred_check_branch
      %39 = sbr.rel (0) target = $region25
    $region24: #{tpu_custom_call.1} parent=1 // pred_region
      %41 = vsyncadd [#allocation6], 0
      %s42 = sshll.u32 %s5, 4
      %s43 = int_to_ptr.hbm [resolvable:$true] %s42
      %s44 = sshll.u32 [#allocation5], 4
      %s45 = int_to_ptr.vmem [resolvable:$true] %s44
      %50 = dma.hbm_to_vmem [thread:$0]  %s43, 2048, %s45, [#allocation6], 128, 128, 8
    $region25: #{tpu_custom_call.1} parent=1 // pred_fallthru
      _
    // Predicated region
    $region26: #{tpu_custom_call.1} parent=1 // pred_check
      _
    $region27: #{tpu_custom_call.1} parent=1 // pred_check_branch
      %52 = sbr.rel (0) target = $region29
    $region28: #{tpu_custom_call.1} parent=1 // pred_region
      _
    $region29: #{tpu_custom_call.1} parent=1 // pred_fallthru
      _
    // Predicated region
    $region30: #{tpu_custom_call.1} parent=1 // pred_check
      _
    $region31: #{tpu_custom_call.1} parent=1 // pred_check_branch
      %54 = sbr.rel (0) target = $region33
    $region32: #{tpu_custom_call.1} parent=1 // pred_region
      _
    $region33: #{tpu_custom_call.1} parent=1 // pred_fallthru
      _
    // Predicated region
    $region34: #{tpu_custom_call.1} parent=1 // pred_check
      _
    $region35: #{tpu_custom_call.1} parent=1 // pred_check_branch
      %56 = sbr.rel (0) target = $region37
    $region36: #{tpu_custom_call.1} parent=1 // pred_region
      _
    $region37: #{tpu_custom_call.1} parent=1 // pred_fallthru
      _
    // Predicated region
    $region38: #{tpu_custom_call.1} parent=1 // pred_check
      _
    $region39: #{tpu_custom_call.1} parent=1 // pred_check_branch
      %58 = sbr.rel (0) target = $region41
    $region40: #{tpu_custom_call.1} parent=1 // pred_region
      %60 = dma.done [#allocation4], 256
    $region41: #{tpu_custom_call.1} parent=1 // pred_fallthru
      _
    // Predicated region
    $region42: #{tpu_custom_call.1} parent=1 // pred_check
      _
    $region43: #{tpu_custom_call.1} parent=1 // pred_check_branch
      %62 = sbr.rel (0) target = $region45
    $region44: #{tpu_custom_call.1} parent=1 // pred_region
      %64 = dma.done [#allocation6], 2048
    $region45: #{tpu_custom_call.1} parent=1 // pred_fallthru
      _
    %v65 = vld [vmem:[%s0] sm:$0xff]
    %v66 = vld [vmem:[#allocation3] sm:$0xff]
    %v67 = vld [vmem:[#allocation3 + $0x8] sm:$0xff]
    %v68 = vld [vmem:[%s1] sm:$0xff]
    %v69 = vld [vmem:[%s3] sm:$0xf]
    %vm70 = vcmask 31744
    %v72 = vsel %vm70, %v68, 0
    %vm74 = vcmask 1043456
    %v76 = vsel %vm74, %v69, 0
    %78 = vmatpush.msra.mxu0 0.0
    %79 = vmatpush.msra.mxu0 0.0
    %80 = vmatpush.msra.mxu0 0.0
    %81 = vmatpush.msra.mxu0 0.0
    %82 = vmatpush.msra.mxu0 0.0
    %83 = vmatpush.msra.mxu0 0.0
    %84 = vmatpush.msra.mxu0 0.0
    %85 = vmatpush.msra.mxu0 0.0
    %86 = vmatpush.msra.mxu0 0.0
    %87 = vmatpush.msra.mxu0 0.0
    %88 = vmatpush.msra.mxu0 0.0
    %89 = vmatpush.msra.mxu0 0.0
    %90 = vmatpush.msra.mxu0 0.0
    %91 = vmatpush.msra.mxu0 0.0
    %92 = vmatpush.msra.mxu0 0.0
    %93 = vmatpush.msra.mxu0 %v76
    %94 = vmatmul.f32.gmra.mxu0 %v72
    %v95 = vpop.f32.mrf.mxu0
    %v96 = vadd.f32 0.0, %v95
    %97 = vdwg.mxu0
    %vm98 = vcmask 130048
    %v100 = vsel %vm98, %v65, 0
    %102 = vmatpush.msra.mxu0 0.0
    %103 = vmatpush.msra.mxu0 0.0
    %104 = vmatpush.msra.mxu0 0.0
    %105 = vmatpush.msra.mxu0 0.0
    %106 = vmatpush.msra.mxu0 0.0
    %107 = vmatpush.msra.mxu0 0.0
    %108 = vmatpush.msra.mxu0 0.0
    %109 = vmatpush.msra.mxu0 0.0
    %110 = vmatpush.msra.mxu0 0.0
    %111 = vmatpush.msra.mxu0 0.0
    %112 = vmatpush.msra.mxu0 0.0
    %113 = vmatpush.msra.mxu0 0.0
    %114 = vmatpush.msra.mxu0 0.0
    %115 = vmatpush.msra.mxu0 0.0
    %116 = vmatpush.msra.mxu0 %v67
    %117 = vmatpush.msra.mxu0 %v66
    %118 = vmatmul.f32.gmra.mxu0 %v100
    %v119 = vpop.f32.mrf.mxu0
    %v120 = vadd.f32 %v96, %v119
    %121 = vdwg.mxu0
    %v122 = vld [vmem:[%s4] sm:$0x1]
    %v124 = vperm.slane %v122, 0
    %v126 = vadd.f32 %v120, %v124
    %v127 = vmax.f32 %v126, 0.0
    %v128 = vld [vmem:[#allocation5] sm:$0xff]
    %v129 = vld [vmem:[#allocation5 + $0x8] sm:$0xff]
    %v130 = vld [vmem:[#allocation5 + $0x10] sm:$0xff]
    %v131 = vld [vmem:[#allocation5 + $0x18] sm:$0xff]
    %v132 = vld [vmem:[#allocation5 + $0x20] sm:$0xff]
    %v133 = vld [vmem:[#allocation5 + $0x28] sm:$0xff]
    %v134 = vld [vmem:[#allocation5 + $0x30] sm:$0xff]
    %v135 = vld [vmem:[#allocation5 + $0x38] sm:$0xff]
    %v136 = vld [vmem:[#allocation5 + $0x40] sm:$0xff]
    %v137 = vld [vmem:[#allocation5 + $0x48] sm:$0xff]
    %v138 = vld [vmem:[#allocation5 + $0x50] sm:$0xff]
    %v139 = vld [vmem:[#allocation5 + $0x58] sm:$0xff]
    %v140 = vld [vmem:[#allocation5 + $0x60] sm:$0xff]
    %v141 = vld [vmem:[#allocation5 + $0x68] sm:$0xff]
    %v142 = vld [vmem:[#allocation5 + $0x70] sm:$0xff]
    %v143 = vld [vmem:[#allocation5 + $0x78] sm:$0xff]
    %v144 = vld [vmem:[%s6] sm:$0x1]
    %v146 = vperm.slane %v144, 0
    %148 = vmatpush.msra.mxu0 %v143
    %149 = vmatpush.msra.mxu0 %v142
    %150 = vmatpush.msra.mxu0 %v141
    %151 = vmatpush.msra.mxu0 %v140
    %152 = vmatpush.msra.mxu0 %v139
    %153 = vmatpush.msra.mxu0 %v138
    %154 = vmatpush.msra.mxu0 %v137
    %155 = vmatpush.msra.mxu0 %v136
    %156 = vmatpush.msra.mxu0 %v135
    %157 = vmatpush.msra.mxu0 %v134
    %158 = vmatpush.msra.mxu0 %v133
    %159 = vmatpush.msra.mxu0 %v132
    %160 = vmatpush.msra.mxu0 %v131
    %161 = vmatpush.msra.mxu0 %v130
    %162 = vmatpush.msra.mxu0 %v129
    %163 = vmatpush.msra.mxu0 %v128
    %164 = vmatmul.f32.gmra.mxu0 %v127
    %v165 = vpop.f32.mrf.mxu0
    %v166 = vadd.f32 %v146, %v165
    %167 = vdwg.mxu0
    %v168 = vmax.f32 %v166, 0.0
    %v169 = vld [vmem:[%s7] sm:$0x1]
    %v171 = vperm.slane %v169, 0
    %v173 = vmul.f32 %v168, %v171
    %174 = vadd.xlane.f32.xlu0 %v173
    %v175 = vpop.xlane.xlu0 %174
    %s176 = sld [smem:[#allocation2]]
    %v177 = vstv %s176
    %v178 = vadd.f32 %v175, %v177
    %vm179 = vcmask 7168
    %180 = vst.msk [vmem:[%s9] sm:$0xff] %vm179, %v178
    // Predicated region
    $region46: #{tpu_custom_call.1} parent=1 // pred_check
      _
    $region47: #{tpu_custom_call.1} parent=1 // pred_check_branch
      %182 = sbr.rel (0) target = $region49
    $region48: #{tpu_custom_call.1} parent=1 // pred_region
      _
    $region49: #{tpu_custom_call.1} parent=1 // pred_fallthru
      _
    // Predicated region
    $region50: #{tpu_custom_call.1} parent=1 // pred_check
      _
    $region51: #{tpu_custom_call.1} parent=1 // pred_check_branch
      %184 = sbr.rel (0) target = $region53
    $region52: #{tpu_custom_call.1} parent=1 // pred_region
      _
    $region53: #{tpu_custom_call.1} parent=1 // pred_fallthru
      _
    %185 = vsyncpa [#allocation4], 1
    %186 = vsyncpa [#allocation6], 1

</llo_original>
